<compile_context>
chip_gen: v5e
topology: v5e:2x2
jax: 0.10.0
libtpu: 0.0.40
codegen_flags: <defaults>
</compile_context>

<pallas_src>
import functools
import math

import jax
import jax.numpy as jnp
from jax.experimental import pallas as pl
from jax.experimental.pallas import tpu as pltpu

# ----------------------------- configuration -------------------------------
B, S = 2, 8          # batch (num sentences), max sequence length
H = 32               # hidden dimension (768 in the real model)
NH, DH = 4, 8        # heads, head dim (NH * DH == H)
FFN = 64             # feed-forward inner dim
VOCAB = 128          # toy vocabulary (lane-dense: multiple of 128)
EPS = 1e-6
F32 = jnp.float32
BF16 = jnp.bfloat16


# ------------------------------- fused kernel -------------------------------
def _rms(x, g):
    # RMSNorm in f32 (keep VPU/EUP math f32 — v5e has no bf16 VPU).
    var = jnp.mean(x * x, axis=-1, keepdims=True)
    return x * jax.lax.rsqrt(var + EPS) * g


def _fused_kernel(ids_ref, mrow_ref, mcol_ref, emb_ref, g_attn_ref, wqkv_ref,
                  wo_ref, g_ffn_ref, w1_ref, w2_ref, o_ref):
    # One grid step == one sentence.  Everything below lives in VMEM/vregs.
    ids_col = ids_ref[0]                                   # (S, 1) int32
    mask_row = mrow_ref[0]                                 # (1, S) f32  (keys)
    mask_col = mcol_ref[0]                                 # (S, 1) f32  (pool)

    # ---- embedding lookup as one-hot matmul (MXU) ----
    iota_v = jax.lax.broadcasted_iota(jnp.int32, (S, VOCAB), 1)
    onehot = (iota_v == ids_col).astype(BF16)              # (S, VOCAB)
    x = jnp.dot(onehot, emb_ref[...], preferred_element_type=F32)   # (S, H) f32

    # ---- self-attention sub-block (pre-RMSNorm, residual) ----
    h = _rms(x, g_attn_ref[...])                           # (S, H) f32
    qkv = jnp.dot(h.astype(BF16), wqkv_ref[...],
                  preferred_element_type=F32)              # (S, 3H) f32
    bias = jnp.where(mask_row > 0.0,
                     jnp.float32(0.0), jnp.float32(-1e9))  # (1, S)
    wo = wo_ref[...]                                       # (H, H) bf16
    # NOTE: 1/sqrt(DH) scaling kept from the previous version; faithful T5
    # folds this into weight init instead.
    scale = 1.0 / math.sqrt(DH)

    attn_out = None
    for hh in range(NH):                                   # static unroll
        q_h = qkv[:, hh * DH:(hh + 1) * DH]                # (S, DH)
        k_h = qkv[:, H + hh * DH: H + (hh + 1) * DH]
        v_h = qkv[:, 2 * H + hh * DH: 2 * H + (hh + 1) * DH]
        # scores = Q @ K^T  (contract last dims; no explicit transpose)
        s_h = jax.lax.dot_general(
            q_h.astype(BF16), k_h.astype(BF16),
            (((1,), (1,)), ((), ())),
            preferred_element_type=F32) * scale + bias      # (S, S) f32
        m_h = jnp.max(s_h, axis=-1, keepdims=True)
        p_h = jnp.exp(s_h - m_h)
        denom = jnp.sum(p_h, axis=-1, keepdims=True)
        p_h = p_h * pl.reciprocal(denom, approx=True)
        ctx_h = jnp.dot(p_h.astype(BF16), v_h.astype(BF16),
                        preferred_element_type=F32)         # (S, DH)
        # fold the output projection per head: sum_h ctx_h @ wo[h*DH:(h+1)*DH]
        part = jnp.dot(ctx_h.astype(BF16), wo[hh * DH:(hh + 1) * DH, :],
                       preferred_element_type=F32)          # (S, H)
        attn_out = part if attn_out is None else attn_out + part

    y = x + attn_out                                        # fused residual

    # ---- feed-forward sub-block (pre-RMSNorm, ReLU, residual) ----
    h2 = _rms(y, g_ffn_ref[...])
    ff = jnp.dot(h2.astype(BF16), w1_ref[...], preferred_element_type=F32)
    ff = jnp.maximum(ff, 0.0)                               # ReLU (T5 FFN)
    ff = jnp.dot(ff.astype(BF16), w2_ref[...], preferred_element_type=F32)
    z = y + ff                                              # fused residual

    # ---- Pooling: masked mean over tokens ----
    summed = jnp.sum(z * mask_col, axis=0, keepdims=True)   # (1, H)
    cnt = jnp.sum(mask_col, axis=0, keepdims=True)          # (1, 1)
    inv = pl.reciprocal(jnp.maximum(cnt, 1e-9), approx=True)
    o_ref[0] = summed * inv                                 # (1, H)


# ------------------------------- forward ------------------------------------
@functools.partial(jax.jit)
def sentence_embedder_forward(params, token_ids, attention_mask):
    ids3 = token_ids.astype(jnp.int32).reshape(B, S, 1)
    mrow = attention_mask.astype(F32).reshape(B, 1, S)
    mcol = attention_mask.astype(F32).reshape(B, S, 1)

    out = pl.pallas_call(
        _fused_kernel,
        out_shape=jax.ShapeDtypeStruct((B, 1, H), F32),
        grid_spec=pl.GridSpec(
            grid=(B,),
            in_specs=[
                pl.BlockSpec((1, S, 1), lambda b: (b, 0, 0)),      # ids
                pl.BlockSpec((1, 1, S), lambda b: (b, 0, 0)),      # mask (row)
                pl.BlockSpec((1, S, 1), lambda b: (b, 0, 0)),      # mask (col)
                pl.BlockSpec((VOCAB, H), lambda b: (0, 0)),        # emb
                pl.BlockSpec((1, H), lambda b: (0, 0)),            # g_attn
                pl.BlockSpec((H, 3 * H), lambda b: (0, 0)),        # wqkv
                pl.BlockSpec((H, H), lambda b: (0, 0)),            # wo
                pl.BlockSpec((1, H), lambda b: (0, 0)),            # g_ffn
                pl.BlockSpec((H, FFN), lambda b: (0, 0)),          # w1
                pl.BlockSpec((FFN, H), lambda b: (0, 0)),          # w2
            ],
            out_specs=pl.BlockSpec((1, 1, H), lambda b: (b, 0, 0)),
        ),
        compiler_params=pltpu.CompilerParams(
            dimension_semantics=("parallel",)),   # megacore shard over sentences
    )(ids3, mrow, mcol, params["emb"], params["g_attn"], params["wqkv"],
      params["wo"], params["g_ffn"], params["w1"], params["w2"])

    return out.reshape(B, H)                                # [B, H]


# ----------------------------- parameter init -------------------------------
def init_params(key):
    ks = jax.random.split(key, 8)
    scale = 0.02
    wq = jax.random.normal(ks[1], (H, H), F32) * scale
    wk = jax.random.normal(ks[2], (H, H), F32) * scale
    wv = jax.random.normal(ks[3], (H, H), F32) * scale
    return {
        # matmul weights stored in bf16 (f32 accumulation inside the kernel)
        "emb": (jax.random.normal(ks[0], (VOCAB, H), F32) * scale).astype(BF16),
        "wqkv": jnp.concatenate([wq, wk, wv], axis=1).astype(BF16),   # (H, 3H)
        "wo": (jax.random.normal(ks[4], (H, H), F32) * scale).astype(BF16),
        "w1": (jax.random.normal(ks[5], (H, FFN), F32) * scale).astype(BF16),
        "w2": (jax.random.normal(ks[6], (FFN, H), F32) * scale).astype(BF16),
        # norm gains stay f32
        "g_attn": jnp.ones((1, H), F32),
        "g_ffn": jnp.ones((1, H), F32),
    }


# --------------------------------- main --------------------------------------
if __name__ == "__main__":
    key = jax.random.PRNGKey(0)
    pkey, tkey = jax.random.split(key)
    params = init_params(pkey)

    # deterministic "tokenized sentences": ids + padding mask
    token_ids = jax.random.randint(tkey, (B, S), 1, VOCAB, dtype=jnp.int32)
    # second sentence is shorter -> padded (mask = 0 on the tail)
    attention_mask = jnp.array(
        [[1, 1, 1, 1, 1, 1, 1, 1],
         [1, 1, 1, 1, 1, 0, 0, 0]], dtype=jnp.float32)
    token_ids = token_ids * attention_mask.astype(jnp.int32)

    out = sentence_embedder_forward(params, token_ids, attention_mask)
    out = jax.block_until_ready(out)
    assert out.shape == (B, H) and out.dtype == jnp.float32
    print("KERNEL_OK")
</pallas_src>

<mosaic_0001>
module attributes {stable_mosaic.version = 11 : i64} {
  func.func @_fused_kernel(%arg0: i32, %arg1: memref<1x8x1xi32, #tpu.memory_space<vmem>>, %arg2: memref<1x1x8xf32, #tpu.memory_space<vmem>>, %arg3: memref<1x8x1xf32, #tpu.memory_space<vmem>>, %arg4: memref<128x32xbf16, #tpu.memory_space<vmem>>, %arg5: memref<1x32xf32, #tpu.memory_space<vmem>>, %arg6: memref<32x96xbf16, #tpu.memory_space<vmem>>, %arg7: memref<32x32xbf16, #tpu.memory_space<vmem>>, %arg8: memref<1x32xf32, #tpu.memory_space<vmem>>, %arg9: memref<32x64xbf16, #tpu.memory_space<vmem>>, %arg10: memref<64x32xbf16, #tpu.memory_space<vmem>>, %arg11: memref<1x1x32xf32, #tpu.memory_space<vmem>>) attributes {dimension_semantics = [#tpu.dimension_semantics<parallel>], iteration_bounds = array<i64: 2>, scalar_prefetch = 0 : i64, scratch_operands = 0 : i64, tpu.core_type = #tpu.core_type<tc>, window_params = [{transform_indices = @transform_0, window_bounds = array<i64: 1, 8, 1>}, {transform_indices = @transform_1, window_bounds = array<i64: 1, 1, 8>}, {transform_indices = @transform_2, window_bounds = array<i64: 1, 8, 1>}, {pipeline_mode = #tpu.pipeline_mode<synchronous>, transform_indices = @transform_3, window_bounds = array<i64: 128, 32>}, {pipeline_mode = #tpu.pipeline_mode<synchronous>, transform_indices = @transform_4, window_bounds = array<i64: 1, 32>}, {pipeline_mode = #tpu.pipeline_mode<synchronous>, transform_indices = @transform_5, window_bounds = array<i64: 32, 96>}, {pipeline_mode = #tpu.pipeline_mode<synchronous>, transform_indices = @transform_6, window_bounds = array<i64: 32, 32>}, {pipeline_mode = #tpu.pipeline_mode<synchronous>, transform_indices = @transform_7, window_bounds = array<i64: 1, 32>}, {pipeline_mode = #tpu.pipeline_mode<synchronous>, transform_indices = @transform_8, window_bounds = array<i64: 32, 64>}, {pipeline_mode = #tpu.pipeline_mode<synchronous>, transform_indices = @transform_9, window_bounds = array<i64: 64, 32>}, {transform_indices = @transform_10, window_bounds = array<i64: 1, 1, 32>}]} {
    %c0 = arith.constant 0 : index
    %c0_0 = arith.constant 0 : index
    %c0_1 = arith.constant 0 : index
    %0 = vector.load %arg1[%c0, %c0_0, %c0_1] : memref<1x8x1xi32, #tpu.memory_space<vmem>>, vector<1x8x1xi32>
    %1 = vector.shape_cast %0 : vector<1x8x1xi32> to vector<8x1xi32>
    %c0_2 = arith.constant 0 : index
    %c0_3 = arith.constant 0 : index
    %c0_4 = arith.constant 0 : index
    %2 = vector.load %arg2[%c0_2, %c0_3, %c0_4] : memref<1x1x8xf32, #tpu.memory_space<vmem>>, vector<1x1x8xf32>
    %3 = vector.shape_cast %2 : vector<1x1x8xf32> to vector<1x8xf32>
    %c0_5 = arith.constant 0 : index
    %c0_6 = arith.constant 0 : index
    %c0_7 = arith.constant 0 : index
    %4 = vector.load %arg3[%c0_5, %c0_6, %c0_7] : memref<1x8x1xf32, #tpu.memory_space<vmem>>, vector<1x8x1xf32>
    %5 = vector.shape_cast %4 : vector<1x8x1xf32> to vector<8x1xf32>
    %6 = tpu.iota {dimensions = array<i32: 1>} : vector<8x128xi32>
    %7 = vector.broadcast %1 : vector<8x1xi32> to vector<8x128xi32>
    %8 = arith.cmpi eq, %6, %7 : vector<8x128xi32>
    %9 = arith.extui %8 : vector<8x128xi1> to vector<8x128xi32>
    %10 = arith.sitofp %9 : vector<8x128xi32> to vector<8x128xf32>
    %11 = arith.truncf %10 : vector<8x128xf32> to vector<8x128xbf16>
    %c0_8 = arith.constant 0 : index
    %c0_9 = arith.constant 0 : index
    %12 = vector.load %arg4[%c0_8, %c0_9] : memref<128x32xbf16, #tpu.memory_space<vmem>>, vector<128x32xbf16>
    %cst = arith.constant dense<0.000000e+00> : vector<8x32xf32>
    %13 = tpu.matmul %11, %12, %cst {dimension_numbers = #tpu.dot_dimension_numbers<[1], [0], [0], [1], [0, 0, 1, 1], [], []>} : vector<8x128xbf16>, vector<128x32xbf16>, vector<8x32xf32> -> vector<8x32xf32>
    %c0_10 = arith.constant 0 : index
    %c0_11 = arith.constant 0 : index
    %14 = vector.load %arg5[%c0_10, %c0_11] : memref<1x32xf32, #tpu.memory_space<vmem>>, vector<1x32xf32>
    %15 = arith.mulf %13, %13 : vector<8x32xf32>
    %cst_12 = arith.constant dense<0.000000e+00> : vector<8xf32>
    %16 = vector.multi_reduction <add>, %15, %cst_12 [1] : vector<8x32xf32> to vector<8xf32>
    %17 = vector.shape_cast %16 : vector<8xf32> to vector<8x1xf32>
    %cst_13 = arith.constant 3.200000e+01 : f32
    %18 = vector.broadcast %cst_13 : f32 to vector<8x1xf32>
    %19 = arith.divf %17, %18 : vector<8x1xf32>
    %cst_14 = arith.constant 9.99999997E-7 : f32
    %20 = vector.broadcast %cst_14 : f32 to vector<8x1xf32>
    %21 = arith.addf %19, %20 : vector<8x1xf32>
    %22 = math.rsqrt %21 : vector<8x1xf32>
    %23 = vector.broadcast %22 : vector<8x1xf32> to vector<8x32xf32>
    %24 = arith.mulf %13, %23 : vector<8x32xf32>
    %25 = vector.broadcast %14 : vector<1x32xf32> to vector<8x32xf32>
    %26 = arith.mulf %24, %25 : vector<8x32xf32>
    %27 = arith.truncf %26 : vector<8x32xf32> to vector<8x32xbf16>
    %c0_15 = arith.constant 0 : index
    %c0_16 = arith.constant 0 : index
    %28 = vector.load %arg6[%c0_15, %c0_16] : memref<32x96xbf16, #tpu.memory_space<vmem>>, vector<32x96xbf16>
    %cst_17 = arith.constant dense<0.000000e+00> : vector<8x96xf32>
    %29 = tpu.matmul %27, %28, %cst_17 {dimension_numbers = #tpu.dot_dimension_numbers<[1], [0], [0], [1], [0, 0, 1, 1], [], []>} : vector<8x32xbf16>, vector<32x96xbf16>, vector<8x96xf32> -> vector<8x96xf32>
    %cst_18 = arith.constant 0.000000e+00 : f32
    %30 = vector.broadcast %cst_18 : f32 to vector<1x8xf32>
    %31 = arith.cmpf ogt, %3, %30 : vector<1x8xf32>
    %cst_19 = arith.constant 0.000000e+00 : f32
    %cst_20 = arith.constant -1.000000e+09 : f32
    %32 = vector.broadcast %cst_19 : f32 to vector<1x8xf32>
    %33 = vector.broadcast %cst_20 : f32 to vector<1x8xf32>
    %34 = arith.select %31, %32, %33 : vector<1x8xi1>, vector<1x8xf32>
    %c0_21 = arith.constant 0 : index
    %c0_22 = arith.constant 0 : index
    %35 = vector.load %arg7[%c0_21, %c0_22] : memref<32x32xbf16, #tpu.memory_space<vmem>>, vector<32x32xbf16>
    %36 = vector.extract_strided_slice %29 {offsets = [0, 0], sizes = [8, 8], strides = [1, 1]} : vector<8x96xf32> to vector<8x8xf32>
    %37 = vector.extract_strided_slice %29 {offsets = [0, 32], sizes = [8, 8], strides = [1, 1]} : vector<8x96xf32> to vector<8x8xf32>
    %38 = vector.extract_strided_slice %29 {offsets = [0, 64], sizes = [8, 8], strides = [1, 1]} : vector<8x96xf32> to vector<8x8xf32>
    %39 = arith.truncf %36 : vector<8x8xf32> to vector<8x8xbf16>
    %40 = arith.truncf %37 : vector<8x8xf32> to vector<8x8xbf16>
    %cst_23 = arith.constant dense<0.000000e+00> : vector<8x8xf32>
    %41 = tpu.matmul %39, %40, %cst_23 {dimension_numbers = #tpu.dot_dimension_numbers<[1], [1], [0], [0], [0, 0, 1, 0], [], []>} : vector<8x8xbf16>, vector<8x8xbf16>, vector<8x8xf32> -> vector<8x8xf32>
    %cst_24 = arith.constant 0.353553385 : f32
    %42 = vector.broadcast %cst_24 : f32 to vector<8x8xf32>
    %43 = arith.mulf %41, %42 : vector<8x8xf32>
    %44 = vector.broadcast %34 : vector<1x8xf32> to vector<8x8xf32>
    %45 = arith.addf %43, %44 : vector<8x8xf32>
    %cst_25 = arith.constant dense<0xFF800000> : vector<8xf32>
    %46 = vector.multi_reduction <maximumf>, %45, %cst_25 [1] : vector<8x8xf32> to vector<8xf32>
    %47 = vector.shape_cast %46 : vector<8xf32> to vector<8x1xf32>
    %48 = vector.broadcast %47 : vector<8x1xf32> to vector<8x8xf32>
    %49 = arith.subf %45, %48 : vector<8x8xf32>
    %50 = math.exp %49 : vector<8x8xf32>
    %cst_26 = arith.constant dense<0.000000e+00> : vector<8xf32>
    %51 = vector.multi_reduction <add>, %50, %cst_26 [1] : vector<8x8xf32> to vector<8xf32>
    %52 = vector.shape_cast %51 : vector<8xf32> to vector<8x1xf32>
    %53 = tpu.reciprocal %52 {approx = true} : vector<8x1xf32> -> vector<8x1xf32>
    %54 = vector.broadcast %53 : vector<8x1xf32> to vector<8x8xf32>
    %55 = arith.mulf %50, %54 : vector<8x8xf32>
    %56 = arith.truncf %55 : vector<8x8xf32> to vector<8x8xbf16>
    %57 = arith.truncf %38 : vector<8x8xf32> to vector<8x8xbf16>
    %cst_27 = arith.constant dense<0.000000e+00> : vector<8x8xf32>
    %58 = tpu.matmul %56, %57, %cst_27 {dimension_numbers = #tpu.dot_dimension_numbers<[1], [0], [0], [1], [0, 0, 1, 1], [], []>} : vector<8x8xbf16>, vector<8x8xbf16>, vector<8x8xf32> -> vector<8x8xf32>
    %59 = arith.truncf %58 : vector<8x8xf32> to vector<8x8xbf16>
    %60 = vector.extract_strided_slice %35 {offsets = [0, 0], sizes = [8, 32], strides = [1, 1]} : vector<32x32xbf16> to vector<8x32xbf16>
    %cst_28 = arith.constant dense<0.000000e+00> : vector<8x32xf32>
    %61 = tpu.matmul %59, %60, %cst_28 {dimension_numbers = #tpu.dot_dimension_numbers<[1], [0], [0], [1], [0, 0, 1, 1], [], []>} : vector<8x8xbf16>, vector<8x32xbf16>, vector<8x32xf32> -> vector<8x32xf32>
    %62 = vector.extract_strided_slice %29 {offsets = [0, 8], sizes = [8, 8], strides = [1, 1]} : vector<8x96xf32> to vector<8x8xf32>
    %63 = vector.extract_strided_slice %29 {offsets = [0, 40], sizes = [8, 8], strides = [1, 1]} : vector<8x96xf32> to vector<8x8xf32>
    %64 = vector.extract_strided_slice %29 {offsets = [0, 72], sizes = [8, 8], strides = [1, 1]} : vector<8x96xf32> to vector<8x8xf32>
    %65 = arith.truncf %62 : vector<8x8xf32> to vector<8x8xbf16>
    %66 = arith.truncf %63 : vector<8x8xf32> to vector<8x8xbf16>
    %cst_29 = arith.constant dense<0.000000e+00> : vector<8x8xf32>
    %67 = tpu.matmul %65, %66, %cst_29 {dimension_numbers = #tpu.dot_dimension_numbers<[1], [1], [0], [0], [0, 0, 1, 0], [], []>} : vector<8x8xbf16>, vector<8x8xbf16>, vector<8x8xf32> -> vector<8x8xf32>
    %cst_30 = arith.constant 0.353553385 : f32
    %68 = vector.broadcast %cst_30 : f32 to vector<8x8xf32>
    %69 = arith.mulf %67, %68 : vector<8x8xf32>
    %70 = vector.broadcast %34 : vector<1x8xf32> to vector<8x8xf32>
    %71 = arith.addf %69, %70 : vector<8x8xf32>
    %cst_31 = arith.constant dense<0xFF800000> : vector<8xf32>
    %72 = vector.multi_reduction <maximumf>, %71, %cst_31 [1] : vector<8x8xf32> to vector<8xf32>
    %73 = vector.shape_cast %72 : vector<8xf32> to vector<8x1xf32>
    %74 = vector.broadcast %73 : vector<8x1xf32> to vector<8x8xf32>
    %75 = arith.subf %71, %74 : vector<8x8xf32>
    %76 = math.exp %75 : vector<8x8xf32>
    %cst_32 = arith.constant dense<0.000000e+00> : vector<8xf32>
    %77 = vector.multi_reduction <add>, %76, %cst_32 [1] : vector<8x8xf32> to vector<8xf32>
    %78 = vector.shape_cast %77 : vector<8xf32> to vector<8x1xf32>
    %79 = tpu.reciprocal %78 {approx = true} : vector<8x1xf32> -> vector<8x1xf32>
    %80 = vector.broadcast %79 : vector<8x1xf32> to vector<8x8xf32>
    %81 = arith.mulf %76, %80 : vector<8x8xf32>
    %82 = arith.truncf %81 : vector<8x8xf32> to vector<8x8xbf16>
    %83 = arith.truncf %64 : vector<8x8xf32> to vector<8x8xbf16>
    %cst_33 = arith.constant dense<0.000000e+00> : vector<8x8xf32>
    %84 = tpu.matmul %82, %83, %cst_33 {dimension_numbers = #tpu.dot_dimension_numbers<[1], [0], [0], [1], [0, 0, 1, 1], [], []>} : vector<8x8xbf16>, vector<8x8xbf16>, vector<8x8xf32> -> vector<8x8xf32>
    %85 = arith.truncf %84 : vector<8x8xf32> to vector<8x8xbf16>
    %86 = vector.extract_strided_slice %35 {offsets = [8, 0], sizes = [8, 32], strides = [1, 1]} : vector<32x32xbf16> to vector<8x32xbf16>
    %cst_34 = arith.constant dense<0.000000e+00> : vector<8x32xf32>
    %87 = tpu.matmul %85, %86, %cst_34 {dimension_numbers = #tpu.dot_dimension_numbers<[1], [0], [0], [1], [0, 0, 1, 1], [], []>} : vector<8x8xbf16>, vector<8x32xbf16>, vector<8x32xf32> -> vector<8x32xf32>
    %88 = arith.addf %61, %87 : vector<8x32xf32>
    %89 = vector.extract_strided_slice %29 {offsets = [0, 16], sizes = [8, 8], strides = [1, 1]} : vector<8x96xf32> to vector<8x8xf32>
    %90 = vector.extract_strided_slice %29 {offsets = [0, 48], sizes = [8, 8], strides = [1, 1]} : vector<8x96xf32> to vector<8x8xf32>
    %91 = vector.extract_strided_slice %29 {offsets = [0, 80], sizes = [8, 8], strides = [1, 1]} : vector<8x96xf32> to vector<8x8xf32>
    %92 = arith.truncf %89 : vector<8x8xf32> to vector<8x8xbf16>
    %93 = arith.truncf %90 : vector<8x8xf32> to vector<8x8xbf16>
    %cst_35 = arith.constant dense<0.000000e+00> : vector<8x8xf32>
    %94 = tpu.matmul %92, %93, %cst_35 {dimension_numbers = #tpu.dot_dimension_numbers<[1], [1], [0], [0], [0, 0, 1, 0], [], []>} : vector<8x8xbf16>, vector<8x8xbf16>, vector<8x8xf32> -> vector<8x8xf32>
    %cst_36 = arith.constant 0.353553385 : f32
    %95 = vector.broadcast %cst_36 : f32 to vector<8x8xf32>
    %96 = arith.mulf %94, %95 : vector<8x8xf32>
    %97 = vector.broadcast %34 : vector<1x8xf32> to vector<8x8xf32>
    %98 = arith.addf %96, %97 : vector<8x8xf32>
    %cst_37 = arith.constant dense<0xFF800000> : vector<8xf32>
    %99 = vector.multi_reduction <maximumf>, %98, %cst_37 [1] : vector<8x8xf32> to vector<8xf32>
    %100 = vector.shape_cast %99 : vector<8xf32> to vector<8x1xf32>
    %101 = vector.broadcast %100 : vector<8x1xf32> to vector<8x8xf32>
    %102 = arith.subf %98, %101 : vector<8x8xf32>
    %103 = math.exp %102 : vector<8x8xf32>
    %cst_38 = arith.constant dense<0.000000e+00> : vector<8xf32>
    %104 = vector.multi_reduction <add>, %103, %cst_38 [1] : vector<8x8xf32> to vector<8xf32>
    %105 = vector.shape_cast %104 : vector<8xf32> to vector<8x1xf32>
    %106 = tpu.reciprocal %105 {approx = true} : vector<8x1xf32> -> vector<8x1xf32>
    %107 = vector.broadcast %106 : vector<8x1xf32> to vector<8x8xf32>
    %108 = arith.mulf %103, %107 : vector<8x8xf32>
    %109 = arith.truncf %108 : vector<8x8xf32> to vector<8x8xbf16>
    %110 = arith.truncf %91 : vector<8x8xf32> to vector<8x8xbf16>
    %cst_39 = arith.constant dense<0.000000e+00> : vector<8x8xf32>
    %111 = tpu.matmul %109, %110, %cst_39 {dimension_numbers = #tpu.dot_dimension_numbers<[1], [0], [0], [1], [0, 0, 1, 1], [], []>} : vector<8x8xbf16>, vector<8x8xbf16>, vector<8x8xf32> -> vector<8x8xf32>
    %112 = arith.truncf %111 : vector<8x8xf32> to vector<8x8xbf16>
    %113 = vector.extract_strided_slice %35 {offsets = [16, 0], sizes = [8, 32], strides = [1, 1]} : vector<32x32xbf16> to vector<8x32xbf16>
    %cst_40 = arith.constant dense<0.000000e+00> : vector<8x32xf32>
    %114 = tpu.matmul %112, %113, %cst_40 {dimension_numbers = #tpu.dot_dimension_numbers<[1], [0], [0], [1], [0, 0, 1, 1], [], []>} : vector<8x8xbf16>, vector<8x32xbf16>, vector<8x32xf32> -> vector<8x32xf32>
    %115 = arith.addf %88, %114 : vector<8x32xf32>
    %116 = vector.extract_strided_slice %29 {offsets = [0, 24], sizes = [8, 8], strides = [1, 1]} : vector<8x96xf32> to vector<8x8xf32>
    %117 = vector.extract_strided_slice %29 {offsets = [0, 56], sizes = [8, 8], strides = [1, 1]} : vector<8x96xf32> to vector<8x8xf32>
    %118 = vector.extract_strided_slice %29 {offsets = [0, 88], sizes = [8, 8], strides = [1, 1]} : vector<8x96xf32> to vector<8x8xf32>
    %119 = arith.truncf %116 : vector<8x8xf32> to vector<8x8xbf16>
    %120 = arith.truncf %117 : vector<8x8xf32> to vector<8x8xbf16>
    %cst_41 = arith.constant dense<0.000000e+00> : vector<8x8xf32>
    %121 = tpu.matmul %119, %120, %cst_41 {dimension_numbers = #tpu.dot_dimension_numbers<[1], [1], [0], [0], [0, 0, 1, 0], [], []>} : vector<8x8xbf16>, vector<8x8xbf16>, vector<8x8xf32> -> vector<8x8xf32>
    %cst_42 = arith.constant 0.353553385 : f32
    %122 = vector.broadcast %cst_42 : f32 to vector<8x8xf32>
    %123 = arith.mulf %121, %122 : vector<8x8xf32>
    %124 = vector.broadcast %34 : vector<1x8xf32> to vector<8x8xf32>
    %125 = arith.addf %123, %124 : vector<8x8xf32>
    %cst_43 = arith.constant dense<0xFF800000> : vector<8xf32>
    %126 = vector.multi_reduction <maximumf>, %125, %cst_43 [1] : vector<8x8xf32> to vector<8xf32>
    %127 = vector.shape_cast %126 : vector<8xf32> to vector<8x1xf32>
    %128 = vector.broadcast %127 : vector<8x1xf32> to vector<8x8xf32>
    %129 = arith.subf %125, %128 : vector<8x8xf32>
    %130 = math.exp %129 : vector<8x8xf32>
    %cst_44 = arith.constant dense<0.000000e+00> : vector<8xf32>
    %131 = vector.multi_reduction <add>, %130, %cst_44 [1] : vector<8x8xf32> to vector<8xf32>
    %132 = vector.shape_cast %131 : vector<8xf32> to vector<8x1xf32>
    %133 = tpu.reciprocal %132 {approx = true} : vector<8x1xf32> -> vector<8x1xf32>
    %134 = vector.broadcast %133 : vector<8x1xf32> to vector<8x8xf32>
    %135 = arith.mulf %130, %134 : vector<8x8xf32>
    %136 = arith.truncf %135 : vector<8x8xf32> to vector<8x8xbf16>
    %137 = arith.truncf %118 : vector<8x8xf32> to vector<8x8xbf16>
    %cst_45 = arith.constant dense<0.000000e+00> : vector<8x8xf32>
    %138 = tpu.matmul %136, %137, %cst_45 {dimension_numbers = #tpu.dot_dimension_numbers<[1], [0], [0], [1], [0, 0, 1, 1], [], []>} : vector<8x8xbf16>, vector<8x8xbf16>, vector<8x8xf32> -> vector<8x8xf32>
    %139 = arith.truncf %138 : vector<8x8xf32> to vector<8x8xbf16>
    %140 = vector.extract_strided_slice %35 {offsets = [24, 0], sizes = [8, 32], strides = [1, 1]} : vector<32x32xbf16> to vector<8x32xbf16>
    %cst_46 = arith.constant dense<0.000000e+00> : vector<8x32xf32>
    %141 = tpu.matmul %139, %140, %cst_46 {dimension_numbers = #tpu.dot_dimension_numbers<[1], [0], [0], [1], [0, 0, 1, 1], [], []>} : vector<8x8xbf16>, vector<8x32xbf16>, vector<8x32xf32> -> vector<8x32xf32>
    %142 = arith.addf %115, %141 : vector<8x32xf32>
    %143 = arith.addf %13, %142 : vector<8x32xf32>
    %c0_47 = arith.constant 0 : index
    %c0_48 = arith.constant 0 : index
    %144 = vector.load %arg8[%c0_47, %c0_48] : memref<1x32xf32, #tpu.memory_space<vmem>>, vector<1x32xf32>
    %145 = arith.mulf %143, %143 : vector<8x32xf32>
    %cst_49 = arith.constant dense<0.000000e+00> : vector<8xf32>
    %146 = vector.multi_reduction <add>, %145, %cst_49 [1] : vector<8x32xf32> to vector<8xf32>
    %147 = vector.shape_cast %146 : vector<8xf32> to vector<8x1xf32>
    %cst_50 = arith.constant 3.200000e+01 : f32
    %148 = vector.broadcast %cst_50 : f32 to vector<8x1xf32>
    %149 = arith.divf %147, %148 : vector<8x1xf32>
    %cst_51 = arith.constant 9.99999997E-7 : f32
    %150 = vector.broadcast %cst_51 : f32 to vector<8x1xf32>
    %151 = arith.addf %149, %150 : vector<8x1xf32>
    %152 = math.rsqrt %151 : vector<8x1xf32>
    %153 = vector.broadcast %152 : vector<8x1xf32> to vector<8x32xf32>
    %154 = arith.mulf %143, %153 : vector<8x32xf32>
    %155 = vector.broadcast %144 : vector<1x32xf32> to vector<8x32xf32>
    %156 = arith.mulf %154, %155 : vector<8x32xf32>
    %157 = arith.truncf %156 : vector<8x32xf32> to vector<8x32xbf16>
    %c0_52 = arith.constant 0 : index
    %c0_53 = arith.constant 0 : index
    %158 = vector.load %arg9[%c0_52, %c0_53] : memref<32x64xbf16, #tpu.memory_space<vmem>>, vector<32x64xbf16>
    %cst_54 = arith.constant dense<0.000000e+00> : vector<8x64xf32>
    %159 = tpu.matmul %157, %158, %cst_54 {dimension_numbers = #tpu.dot_dimension_numbers<[1], [0], [0], [1], [0, 0, 1, 1], [], []>} : vector<8x32xbf16>, vector<32x64xbf16>, vector<8x64xf32> -> vector<8x64xf32>
    %cst_55 = arith.constant 0.000000e+00 : f32
    %160 = vector.broadcast %cst_55 : f32 to vector<8x64xf32>
    %161 = arith.maximumf %159, %160 : vector<8x64xf32>
    %162 = arith.truncf %161 : vector<8x64xf32> to vector<8x64xbf16>
    %c0_56 = arith.constant 0 : index
    %c0_57 = arith.constant 0 : index
    %163 = vector.load %arg10[%c0_56, %c0_57] : memref<64x32xbf16, #tpu.memory_space<vmem>>, vector<64x32xbf16>
    %cst_58 = arith.constant dense<0.000000e+00> : vector<8x32xf32>
    %164 = tpu.matmul %162, %163, %cst_58 {dimension_numbers = #tpu.dot_dimension_numbers<[1], [0], [0], [1], [0, 0, 1, 1], [], []>} : vector<8x64xbf16>, vector<64x32xbf16>, vector<8x32xf32> -> vector<8x32xf32>
    %165 = arith.addf %143, %164 : vector<8x32xf32>
    %166 = vector.broadcast %5 : vector<8x1xf32> to vector<8x32xf32>
    %167 = arith.mulf %165, %166 : vector<8x32xf32>
    %cst_59 = arith.constant dense<0.000000e+00> : vector<32xf32>
    %168 = vector.multi_reduction <add>, %167, %cst_59 [0] : vector<8x32xf32> to vector<32xf32>
    %169 = vector.shape_cast %168 : vector<32xf32> to vector<1x32xf32>
    %cst_60 = arith.constant dense<0.000000e+00> : vector<1xf32>
    %170 = vector.multi_reduction <add>, %5, %cst_60 [0] : vector<8x1xf32> to vector<1xf32>
    %171 = vector.shape_cast %170 : vector<1xf32> to vector<1x1xf32>
    %cst_61 = arith.constant 9.99999971E-10 : f32
    %172 = vector.broadcast %cst_61 : f32 to vector<1x1xf32>
    %173 = arith.maximumf %171, %172 : vector<1x1xf32>
    %174 = tpu.reciprocal %173 {approx = true} : vector<1x1xf32> -> vector<1x1xf32>
    %175 = vector.broadcast %174 : vector<1x1xf32> to vector<1x32xf32>
    %176 = arith.mulf %169, %175 : vector<1x32xf32>
    %c0_62 = arith.constant 0 : index
    %c0_63 = arith.constant 0 : index
    %c0_64 = arith.constant 0 : index
    %177 = vector.load %arg11[%c0_62, %c0_63, %c0_64] : memref<1x1x32xf32, #tpu.memory_space<vmem>>, vector<1x1x32xf32>
    %178 = vector.shape_cast %177 : vector<1x1x32xf32> to vector<1x32xf32>
    %179 = vector.shape_cast %176 : vector<1x32xf32> to vector<1x1x32xf32>
    tpu.vector_store %arg11[%c0_62, %c0_63, %c0_64], %179 {strides = array<i32>} : memref<1x1x32xf32, #tpu.memory_space<vmem>>, vector<1x1x32xf32>,
    return
  }
  func.func @transform_0(%arg0: i32) -> (i32, i32, i32) {
    %c0_i32 = arith.constant 0 : i32
    %c0_i32_0 = arith.constant 0 : i32
    %c0_i32_1 = arith.constant 0 : i32
    return %arg0, %c0_i32, %c0_i32_0 : i32, i32, i32
  }
  func.func @transform_1(%arg0: i32) -> (i32, i32, i32) {
    %c0_i32 = arith.constant 0 : i32
    %c0_i32_0 = arith.constant 0 : i32
    %c0_i32_1 = arith.constant 0 : i32
    return %arg0, %c0_i32, %c0_i32_0 : i32, i32, i32
  }
  func.func @transform_2(%arg0: i32) -> (i32, i32, i32) {
    %c0_i32 = arith.constant 0 : i32
    %c0_i32_0 = arith.constant 0 : i32
    %c0_i32_1 = arith.constant 0 : i32
    return %arg0, %c0_i32, %c0_i32_0 : i32, i32, i32
  }
  func.func @transform_3(%arg0: i32) -> (i32, i32) {
    %c0_i32 = arith.constant 0 : i32
    %c0_i32_0 = arith.constant 0 : i32
    %c0_i32_1 = arith.constant 0 : i32
    return %c0_i32, %c0_i32_0 : i32, i32
  }
  func.func @transform_4(%arg0: i32) -> (i32, i32) {
    %c0_i32 = arith.constant 0 : i32
    %c0_i32_0 = arith.constant 0 : i32
    %c0_i32_1 = arith.constant 0 : i32
    return %c0_i32, %c0_i32_0 : i32, i32
  }
  func.func @transform_5(%arg0: i32) -> (i32, i32) {
    %c0_i32 = arith.constant 0 : i32
    %c0_i32_0 = arith.constant 0 : i32
    %c0_i32_1 = arith.constant 0 : i32
    return %c0_i32, %c0_i32_0 : i32, i32
  }
  func.func @transform_6(%arg0: i32) -> (i32, i32) {
    %c0_i32 = arith.constant 0 : i32
    %c0_i32_0 = arith.constant 0 : i32
    %c0_i32_1 = arith.constant 0 : i32
    return %c0_i32, %c0_i32_0 : i32, i32
  }
  func.func @transform_7(%arg0: i32) -> (i32, i32) {
    %c0_i32 = arith.constant 0 : i32
    %c0_i32_0 = arith.constant 0 : i32
    %c0_i32_1 = arith.constant 0 : i32
    return %c0_i32, %c0_i32_0 : i32, i32
  }
  func.func @transform_8(%arg0: i32) -> (i32, i32) {
    %c0_i32 = arith.constant 0 : i32
    %c0_i32_0 = arith.constant 0 : i32
    %c0_i32_1 = arith.constant 0 : i32
    return %c0_i32, %c0_i32_0 : i32, i32
  }
  func.func @transform_9(%arg0: i32) -> (i32, i32) {
    %c0_i32 = arith.constant 0 : i32
    %c0_i32_0 = arith.constant 0 : i32
    %c0_i32_1 = arith.constant 0 : i32
    return %c0_i32, %c0_i32_0 : i32, i32
  }
  func.func @transform_10(%arg0: i32) -> (i32, i32, i32) {
    %c0_i32 = arith.constant 0 : i32
    %c0_i32_0 = arith.constant 0 : i32
    %c0_i32_1 = arith.constant 0 : i32
    return %arg0, %c0_i32, %c0_i32_0 : i32, i32, i32
  }
}

</mosaic_0001>

<llo_original>
// kernel: sentence_embedder_forward.1
$region0: #{sentence_embedder_forward.1}
  #allocation0 [shape = 'u32[]', space=smem, size = 0x4, offset = 0x4, fixed_abs, tag = 'smem constant byte address 0x4 - core index']
  #allocation1 [shape = 'u32[72,128]{1,0:T(1,128)}', space=vmem, size = 0x9000, scoped, tag = 'internal scratch']
  %s0 = inlined_call_operand.vmem [shape: s32[2,8,1], index: 0, kind: input, shape index: {}]
  %s1 = inlined_call_operand.vmem [shape: f32[2,1,8], index: 1, kind: input, shape index: {}]
  %s2 = inlined_call_operand.vmem [shape: f32[2,8,1], index: 2, kind: input, shape index: {}]
  %s3 = inlined_call_operand.vmem [shape: bf16[128,32], index: 3, kind: input, shape index: {}]
  %s4 = inlined_call_operand.vmem [shape: f32[1,32], index: 4, kind: input, shape index: {}]
  %s5 = inlined_call_operand.vmem [shape: bf16[32,96], index: 5, kind: input, shape index: {}]
  %s6 = inlined_call_operand.vmem [shape: bf16[32,32], index: 6, kind: input, shape index: {}]
  %s7 = inlined_call_operand.vmem [shape: f32[1,32], index: 7, kind: input, shape index: {}]
  %s8 = inlined_call_operand.vmem [shape: bf16[32,64], index: 8, kind: input, shape index: {}]
  %s9 = inlined_call_operand.vmem [shape: bf16[64,32], index: 9, kind: input, shape index: {}]
  %s10 = inlined_call_operand.hbm [shape: f32[2,1,32], index: 10, kind: output, shape index: {}]
  %s11 = sld [smem:[#allocation0]]
  $region73: #{sentence_embedder_forward.1} parent=0
    _
  %s13 = ssub.s32 1, %s11
  %s14 = scalar_select 0, %s13, %s11
  $region1: #{sentence_embedder_forward.1} parent=0
    #allocation2 [shape = 'u8[1024]{0}', space=vmem, size = 0x400, scoped, tag = 'output window, operand 0']
    #allocation3 [shape = 's32[2]{0}', space=sflag, size = 0x8, scoped, tag = 'scoped memory for sentence_embedder_forward.1']
    %15 = vsyncpa [#allocation3], 0
    %s16 = scalar_lea.sflag [#allocation3], 1
    %17 = vsyncpa %s16, 0
    loop: start=0, step=1, limit=4
    $region2: #{sentence_embedder_forward.1} parent=1 // loop_pre_header
      _
    $region3: #{sentence_embedder_forward.1} parent=1 // loop_header
      %s19 = sphi 0, %s23
      %p20 = scmp.ge.s32.totalorder %s19, 4
      %s29 = sphi 0, %s31
      %s32 = sphi 0, %s29
      %s33 = sphi 0, %s32
      %s49 = sphi 0, %s33
      %s55 = sphi 0, %s57
      %s58 = sphi 0, %s55
      %s59 = sphi 0, %s58
      %s75 = sphi 0, %s59
      %s81 = sphi 0, %s83
      %s84 = sphi 0, %s81
      %s85 = sphi 0, %s84
      %s101 = sphi 0, %s85
      %s105 = sphi 0, %s105
      %s107 = sphi 0, %s105
      %s108 = sphi 0, %s107
      %s122 = sphi 0, %s108
      %s126 = sphi 0, %s126
      %s128 = sphi 0, %s126
      %s129 = sphi 0, %s128
      %s143 = sphi 0, %s129
      %s147 = sphi 0, %s147
      %s149 = sphi 0, %s147
      %s150 = sphi 0, %s149
      %s164 = sphi 0, %s150
      %s168 = sphi 0, %s168
      %s170 = sphi 0, %s168
      %s171 = sphi 0, %s170
      %s185 = sphi 0, %s171
      %s189 = sphi 0, %s189
      %s191 = sphi 0, %s189
      %s192 = sphi 0, %s191
      %s206 = sphi 0, %s192
      %s210 = sphi 0, %s210
      %s212 = sphi 0, %s210
      %s213 = sphi 0, %s212
      %s227 = sphi 0, %s213
      %s231 = sphi 0, %s231
      %s233 = sphi 0, %s231
      %s234 = sphi 0, %s233
      %s248 = sphi 0, %s234
      %s254 = sphi 0, %s256
      %s257 = sphi 0, %s254
      %s258 = sphi 0, %s257
      %s274 = sphi 0, %s258
    $region4: #{sentence_embedder_forward.1} parent=1 // loop_header_branch
      %22 = sbr.rel (%p20) target = $region8
    $region5: #{sentence_embedder_forward.1} parent=1 // loop_body
      %s24 = ssub.s32 %s19, 1
      %s25 = ssub.s32 %s19, 2
      %s26 = sadd.s32 %s19, 1
      %s27 = ssub.s32 %s19, %s26
      %p28 = scmp.eq.s32.totalorder %s27, 0
      %s30 = sadd.s32 %s29, 1
      %s31 = scalar_select %p28, %s29, %s30
      %p34 = pneg %p28
      %p35 = scmp.eq.s32.totalorder %s19, 1
      %p36 = por %p34, %p35
      %p37 = scmp.ne.s32.totalorder %s29, %s32
      %p38 = scmp.eq.s32.totalorder %s19, 0
      %p39 = por %p37, %p38
      %p40 = scmp.ne.s32.totalorder %s29, %s32
      %p41 = scmp.eq.s32.totalorder %s24, 1
      %p42 = por %p40, %p41
      %p43 = scmp.ne.s32.totalorder %s32, %s33
      %p44 = scmp.eq.s32.totalorder %s24, 0
      %p45 = por %p43, %p44
      %p46 = scmp.ne.s32.totalorder %s32, %s33
      %p47 = scmp.eq.s32.totalorder %s25, 1
      %p48 = por %p46, %p47
      %p50 = scmp.ne.s32.totalorder %s33, %s49
      %p51 = scmp.eq.s32.totalorder %s25, 0
      %p52 = por %p50, %p51
      %s53 = ssub.s32 %s19, %s26
      %p54 = scmp.eq.s32.totalorder %s53, 0
      %s56 = sadd.s32 %s55, 1
      %s57 = scalar_select %p54, %s55, %s56
      %p60 = pneg %p54
      %p61 = scmp.eq.s32.totalorder %s19, 1
      %p62 = por %p60, %p61
      %p63 = scmp.ne.s32.totalorder %s55, %s58
      %p64 = scmp.eq.s32.totalorder %s19, 0
      %p65 = por %p63, %p64
      %p66 = scmp.ne.s32.totalorder %s55, %s58
      %p67 = scmp.eq.s32.totalorder %s24, 1
      %p68 = por %p66, %p67
      %p69 = scmp.ne.s32.totalorder %s58, %s59
      %p70 = scmp.eq.s32.totalorder %s24, 0
      %p71 = por %p69, %p70
      %p72 = scmp.ne.s32.totalorder %s58, %s59
      %p73 = scmp.eq.s32.totalorder %s25, 1
      %p74 = por %p72, %p73
      %p76 = scmp.ne.s32.totalorder %s59, %s75
      %p77 = scmp.eq.s32.totalorder %s25, 0
      %p78 = por %p76, %p77
      %s79 = ssub.s32 %s19, %s26
      %p80 = scmp.eq.s32.totalorder %s79, 0
      %s82 = sadd.s32 %s81, 1
      %s83 = scalar_select %p80, %s81, %s82
      %p86 = pneg %p80
      %p87 = scmp.eq.s32.totalorder %s19, 1
      %p88 = por %p86, %p87
      %p89 = scmp.ne.s32.totalorder %s81, %s84
      %p90 = scmp.eq.s32.totalorder %s19, 0
      %p91 = por %p89, %p90
      %p92 = scmp.ne.s32.totalorder %s81, %s84
      %p93 = scmp.eq.s32.totalorder %s24, 1
      %p94 = por %p92, %p93
      %p95 = scmp.ne.s32.totalorder %s84, %s85
      %p96 = scmp.eq.s32.totalorder %s24, 0
      %p97 = por %p95, %p96
      %p98 = scmp.ne.s32.totalorder %s84, %s85
      %p99 = scmp.eq.s32.totalorder %s25, 1
      %p100 = por %p98, %p99
      %p102 = scmp.ne.s32.totalorder %s85, %s101
      %p103 = scmp.eq.s32.totalorder %s25, 0
      %p104 = por %p102, %p103
      %s106 = sadd.s32 %s105, 1
      %p109 = scmp.eq.s32.totalorder %s19, 1
      %p110 = scmp.ne.s32.totalorder %s105, %s107
      %p111 = scmp.eq.s32.totalorder %s19, 0
      %p112 = por %p110, %p111
      %p113 = scmp.ne.s32.totalorder %s105, %s107
      %p114 = scmp.eq.s32.totalorder %s24, 1
      %p115 = por %p113, %p114
      %p116 = scmp.ne.s32.totalorder %s107, %s108
      %p117 = scmp.eq.s32.totalorder %s24, 0
      %p118 = por %p116, %p117
      %p119 = scmp.ne.s32.totalorder %s107, %s108
      %p120 = scmp.eq.s32.totalorder %s25, 1
      %p121 = por %p119, %p120
      %p123 = scmp.ne.s32.totalorder %s108, %s122
      %p124 = scmp.eq.s32.totalorder %s25, 0
      %p125 = por %p123, %p124
      %s127 = sadd.s32 %s126, 1
      %p130 = scmp.eq.s32.totalorder %s19, 1
      %p131 = scmp.ne.s32.totalorder %s126, %s128
      %p132 = scmp.eq.s32.totalorder %s19, 0
      %p133 = por %p131, %p132
      %p134 = scmp.ne.s32.totalorder %s126, %s128
      %p135 = scmp.eq.s32.totalorder %s24, 1
      %p136 = por %p134, %p135
      %p137 = scmp.ne.s32.totalorder %s128, %s129
      %p138 = scmp.eq.s32.totalorder %s24, 0
      %p139 = por %p137, %p138
      %p140 = scmp.ne.s32.totalorder %s128, %s129
      %p141 = scmp.eq.s32.totalorder %s25, 1
      %p142 = por %p140, %p141
      %p144 = scmp.ne.s32.totalorder %s129, %s143
      %p145 = scmp.eq.s32.totalorder %s25, 0
      %p146 = por %p144, %p145
      %s148 = sadd.s32 %s147, 1
      %p151 = scmp.eq.s32.totalorder %s19, 1
      %p152 = scmp.ne.s32.totalorder %s147, %s149
      %p153 = scmp.eq.s32.totalorder %s19, 0
      %p154 = por %p152, %p153
      %p155 = scmp.ne.s32.totalorder %s147, %s149
      %p156 = scmp.eq.s32.totalorder %s24, 1
      %p157 = por %p155, %p156
      %p158 = scmp.ne.s32.totalorder %s149, %s150
      %p159 = scmp.eq.s32.totalorder %s24, 0
      %p160 = por %p158, %p159
      %p161 = scmp.ne.s32.totalorder %s149, %s150
      %p162 = scmp.eq.s32.totalorder %s25, 1
      %p163 = por %p161, %p162
      %p165 = scmp.ne.s32.totalorder %s150, %s164
      %p166 = scmp.eq.s32.totalorder %s25, 0
      %p167 = por %p165, %p166
      %s169 = sadd.s32 %s168, 1
      %p172 = scmp.eq.s32.totalorder %s19, 1
      %p173 = scmp.ne.s32.totalorder %s168, %s170
      %p174 = scmp.eq.s32.totalorder %s19, 0
      %p175 = por %p173, %p174
      %p176 = scmp.ne.s32.totalorder %s168, %s170
      %p177 = scmp.eq.s32.totalorder %s24, 1
      %p178 = por %p176, %p177
      %p179 = scmp.ne.s32.totalorder %s170, %s171
      %p180 = scmp.eq.s32.totalorder %s24, 0
      %p181 = por %p179, %p180
      %p182 = scmp.ne.s32.totalorder %s170, %s171
      %p183 = scmp.eq.s32.totalorder %s25, 1
      %p184 = por %p182, %p183
      %p186 = scmp.ne.s32.totalorder %s171, %s185
      %p187 = scmp.eq.s32.totalorder %s25, 0
      %p188 = por %p186, %p187
      %s190 = sadd.s32 %s189, 1
      %p193 = scmp.eq.s32.totalorder %s19, 1
      %p194 = scmp.ne.s32.totalorder %s189, %s191
      %p195 = scmp.eq.s32.totalorder %s19, 0
      %p196 = por %p194, %p195
      %p197 = scmp.ne.s32.totalorder %s189, %s191
      %p198 = scmp.eq.s32.totalorder %s24, 1
      %p199 = por %p197, %p198
      %p200 = scmp.ne.s32.totalorder %s191, %s192
      %p201 = scmp.eq.s32.totalorder %s24, 0
      %p202 = por %p200, %p201
      %p203 = scmp.ne.s32.totalorder %s191, %s192
      %p204 = scmp.eq.s32.totalorder %s25, 1
      %p205 = por %p203, %p204
      %p207 = scmp.ne.s32.totalorder %s192, %s206
      %p208 = scmp.eq.s32.totalorder %s25, 0
      %p209 = por %p207, %p208
      %s211 = sadd.s32 %s210, 1
      %p214 = scmp.eq.s32.totalorder %s19, 1
      %p215 = scmp.ne.s32.totalorder %s210, %s212
      %p216 = scmp.eq.s32.totalorder %s19, 0
      %p217 = por %p215, %p216
      %p218 = scmp.ne.s32.totalorder %s210, %s212
      %p219 = scmp.eq.s32.totalorder %s24, 1
      %p220 = por %p218, %p219
      %p221 = scmp.ne.s32.totalorder %s212, %s213
      %p222 = scmp.eq.s32.totalorder %s24, 0
      %p223 = por %p221, %p222
      %p224 = scmp.ne.s32.totalorder %s212, %s213
      %p225 = scmp.eq.s32.totalorder %s25, 1
      %p226 = por %p224, %p225
      %p228 = scmp.ne.s32.totalorder %s213, %s227
      %p229 = scmp.eq.s32.totalorder %s25, 0
      %p230 = por %p228, %p229
      %s232 = sadd.s32 %s231, 1
      %p235 = scmp.eq.s32.totalorder %s19, 1
      %p236 = scmp.ne.s32.totalorder %s231, %s233
      %p237 = scmp.eq.s32.totalorder %s19, 0
      %p238 = por %p236, %p237
      %p239 = scmp.ne.s32.totalorder %s231, %s233
      %p240 = scmp.eq.s32.totalorder %s24, 1
      %p241 = por %p239, %p240
      %p242 = scmp.ne.s32.totalorder %s233, %s234
      %p243 = scmp.eq.s32.totalorder %s24, 0
      %p244 = por %p242, %p243
      %p245 = scmp.ne.s32.totalorder %s233, %s234
      %p246 = scmp.eq.s32.totalorder %s25, 1
      %p247 = por %p245, %p246
      %p249 = scmp.ne.s32.totalorder %s234, %s248
      %p250 = scmp.eq.s32.totalorder %s25, 0
      %p251 = por %p249, %p250
      %s252 = ssub.s32 %s19, %s26
      %p253 = scmp.eq.s32.totalorder %s252, 0
      %s255 = sadd.s32 %s254, 1
      %s256 = scalar_select %p253, %s254, %s255
      %p259 = pneg %p253
      %p260 = scmp.eq.s32.totalorder %s19, 1
      %p261 = por %p259, %p260
      %p262 = scmp.ne.s32.totalorder %s254, %s257
      %p263 = scmp.eq.s32.totalorder %s19, 0
      %p264 = por %p262, %p263
      %p265 = scmp.ne.s32.totalorder %s254, %s257
      %p266 = scmp.eq.s32.totalorder %s24, 1
      %p267 = por %p265, %p266
      %p268 = scmp.ne.s32.totalorder %s257, %s258
      %p269 = scmp.eq.s32.totalorder %s24, 0
      %p270 = por %p268, %p269
      %p271 = scmp.ne.s32.totalorder %s257, %s258
      %p272 = scmp.eq.s32.totalorder %s25, 1
      %p273 = por %p271, %p272
      %p275 = scmp.ne.s32.totalorder %s258, %s274
      %p276 = scmp.eq.s32.totalorder %s25, 0
      %p277 = por %p275, %p276
      %p278 = scmp.le.s32.totalorder 1, %s19
      %p279 = scmp.lt.s32.totalorder %s19, 3
      %p280 = pnand %p278, %p279
      %p281 = pneg %p280
      // Predicated region
      $region9: #{sentence_embedder_forward.1} parent=5 // pred_check
        _
      $region10: #{sentence_embedder_forward.1} parent=5 // pred_check_branch
        %283 = sbr.rel (%p280) target = $region12
      $region11: #{sentence_embedder_forward.1} parent=5 // pred_region
        %s284 = ssub.s32 %s19, 1
        // Predicated region
        $region13: #{sentence_embedder_forward.1} parent=11 // pred_check
          %p285 = pneg %p118
        $region14: #{sentence_embedder_forward.1} parent=11 // pred_check_branch
          %287 = sbr.rel (%p285) target = $region16
        $region15: #{sentence_embedder_forward.1} parent=11 // pred_region
          _
        $region16: #{sentence_embedder_forward.1} parent=11 // pred_fallthru
          _
        // Predicated region
        $region17: #{sentence_embedder_forward.1} parent=11 // pred_check
          %p288 = pneg %p139
        $region18: #{sentence_embedder_forward.1} parent=11 // pred_check_branch
          %290 = sbr.rel (%p288) target = $region20
        $region19: #{sentence_embedder_forward.1} parent=11 // pred_region
          _
        $region20: #{sentence_embedder_forward.1} parent=11 // pred_fallthru
          _
        // Predicated region
        $region21: #{sentence_embedder_forward.1} parent=11 // pred_check
          %p291 = pneg %p160
        $region22: #{sentence_embedder_forward.1} parent=11 // pred_check_branch
          %293 = sbr.rel (%p291) target = $region24
        $region23: #{sentence_embedder_forward.1} parent=11 // pred_region
          _
        $region24: #{sentence_embedder_forward.1} parent=11 // pred_fallthru
          _
        // Predicated region
        $region25: #{sentence_embedder_forward.1} parent=11 // pred_check
          %p294 = pneg %p181
        $region26: #{sentence_embedder_forward.1} parent=11 // pred_check_branch
          %296 = sbr.rel (%p294) target = $region28
        $region27: #{sentence_embedder_forward.1} parent=11 // pred_region
          _
        $region28: #{sentence_embedder_forward.1} parent=11 // pred_fallthru
          _
        // Predicated region
        $region29: #{sentence_embedder_forward.1} parent=11 // pred_check
          %p297 = pneg %p202
        $region30: #{sentence_embedder_forward.1} parent=11 // pred_check_branch
          %299 = sbr.rel (%p297) target = $region32
        $region31: #{sentence_embedder_forward.1} parent=11 // pred_region
          _
        $region32: #{sentence_embedder_forward.1} parent=11 // pred_fallthru
          _
        // Predicated region
        $region33: #{sentence_embedder_forward.1} parent=11 // pred_check
          %p300 = pneg %p223
        $region34: #{sentence_embedder_forward.1} parent=11 // pred_check_branch
          %302 = sbr.rel (%p300) target = $region36
        $region35: #{sentence_embedder_forward.1} parent=11 // pred_region
          _
        $region36: #{sentence_embedder_forward.1} parent=11 // pred_fallthru
          _
        // Predicated region
        $region37: #{sentence_embedder_forward.1} parent=11 // pred_check
          %p303 = pneg %p244
        $region38: #{sentence_embedder_forward.1} parent=11 // pred_check_branch
          %305 = sbr.rel (%p303) target = $region40
        $region39: #{sentence_embedder_forward.1} parent=11 // pred_region
          _
        $region40: #{sentence_embedder_forward.1} parent=11 // pred_fallthru
          _
      $region12: #{sentence_embedder_forward.1} parent=5 // pred_fallthru
        _
      %p306 = scmp.lt.s32.totalorder %s19, 2
      // Predicated region
      $region41: #{sentence_embedder_forward.1} parent=5 // pred_check
        %p307 = pneg %p306
      $region42: #{sentence_embedder_forward.1} parent=5 // pred_check_branch
        %309 = sbr.rel (%p307) target = $region44
      $region43: #{sentence_embedder_forward.1} parent=5 // pred_region
        // Predicated region
        $region45: #{sentence_embedder_forward.1} parent=43 // pred_check
          %p310 = pneg %p39
        $region46: #{sentence_embedder_forward.1} parent=43 // pred_check_branch
          %312 = sbr.rel (%p310) target = $region48
        $region47: #{sentence_embedder_forward.1} parent=43 // pred_region
          %p313 = scmp.lt.s32.totalorder %s19, 1
          %s314 = scalar_select %p313, %s19, 1
          %s315 = smul.addr %s314, 8
          %s316 = scalar_lea.vmem %s0, %s315
        $region48: #{sentence_embedder_forward.1} parent=43 // pred_fallthru
          _
        // Predicated region
        $region49: #{sentence_embedder_forward.1} parent=43 // pred_check
          %p317 = pneg %p65
        $region50: #{sentence_embedder_forward.1} parent=43 // pred_check_branch
          %319 = sbr.rel (%p317) target = $region52
        $region51: #{sentence_embedder_forward.1} parent=43 // pred_region
          %p320 = scmp.lt.s32.totalorder %s19, 1
          %s321 = scalar_select %p320, %s19, 1
          %s322 = scalar_lea.vmem %s1, %s321
        $region52: #{sentence_embedder_forward.1} parent=43 // pred_fallthru
          _
        // Predicated region
        $region53: #{sentence_embedder_forward.1} parent=43 // pred_check
          %p323 = pneg %p91
        $region54: #{sentence_embedder_forward.1} parent=43 // pred_check_branch
          %325 = sbr.rel (%p323) target = $region56
        $region55: #{sentence_embedder_forward.1} parent=43 // pred_region
          %p326 = scmp.lt.s32.totalorder %s19, 1
          %s327 = scalar_select %p326, %s19, 1
          %s328 = smul.addr %s327, 8
          %s329 = scalar_lea.vmem %s2, %s328
        $region56: #{sentence_embedder_forward.1} parent=43 // pred_fallthru
          _
      $region44: #{sentence_embedder_forward.1} parent=5 // pred_fallthru
        _
      %p330 = scmp.le.s32.totalorder 1, %s19
      %p331 = scmp.lt.s32.totalorder %s19, 3
      %p332 = pnand %p330, %p331
      %p333 = pneg %p332
      // Predicated region
      $region57: #{sentence_embedder_forward.1} parent=5 // pred_check
        _
      $region58: #{sentence_embedder_forward.1} parent=5 // pred_check_branch
        %335 = sbr.rel (%p332) target = $region60
      $region59: #{sentence_embedder_forward.1} parent=5 // pred_region
        %s336 = ssub.s32 %s19, 1
        %p337 = scmp.lt.s32.totalorder %s24, 1
        %s338 = scalar_select %p337, %s24, 1
        %s339 = smul.addr %s338, 8
        %s340 = scalar_lea.vmem %s0, %s339
        %p341 = pneg %p45
        %p342 = pneg %p42
        %p343 = scmp.lt.s32.totalorder %s24, 1
        %s344 = scalar_select %p343, %s24, 1
        %s345 = scalar_lea.vmem %s1, %s344
        %p346 = pneg %p71
        %p347 = pneg %p68
        %p348 = scmp.lt.s32.totalorder %s24, 1
        %s349 = scalar_select %p348, %s24, 1
        %s350 = smul.addr %s349, 8
        %s351 = scalar_lea.vmem %s2, %s350
        %p352 = pneg %p97
        %p353 = pneg %p94
        %p354 = pneg %p118
        %p355 = pneg %p115
        %p356 = pneg %p139
        %p357 = pneg %p136
        %p358 = pneg %p160
        %p359 = pneg %p157
        %p360 = pneg %p181
        %p361 = pneg %p178
        %p362 = pneg %p202
        %p363 = pneg %p199
        %p364 = pneg %p223
        %p365 = pneg %p220
        %p366 = pneg %p244
        %p367 = pneg %p241
        %p368 = pneg %p270
        %p369 = pneg %p267
        %s370 = sand.u32 %s257, 1
        %s371 = scalar_lea.sflag [#allocation3], %s370
        %s372 = sand.u32 %s257, 1
        %s373 = scalar_lea.vmem [#allocation2], %s372
        %p374 = scmp.lt.s32.totalorder %s24, 1
        %s375 = scalar_select %p374, %s24, 1
        %s376 = smul.addr %s375, 8
        %s377 = scalar_lea.vmem %s0, %s376
        %p378 = scmp.lt.s32.totalorder %s24, 1
        %s379 = scalar_select %p378, %s24, 1
        %s380 = scalar_lea.vmem %s1, %s379
        %p381 = scmp.lt.s32.totalorder %s24, 1
        %s382 = scalar_select %p381, %s24, 1
        %s383 = smul.addr %s382, 8
        %s384 = scalar_lea.vmem %s2, %s383
        %v386 = vld [vmem:[%s377] sm:$0xff]
        %v387 = vld [vmem:[%s380] sm:$0x1]
        %v388 = vld [vmem:[%s384] sm:$0xff]
        %v389 = vlaneseq
        %v390 = vand.u32 %v389, 127
        %391 = vset.pattern.permute.xlu0 0
        %392 = vperm.xlu0 %391, %v386
        %v393 = vpop.permute.xlu0 %392
        %vm394 = vcmp.eq.s32.totalorder %v390, %v393
        %v395 = vsel %vm394, 1, 0
        %v396 = vcvt.s32.f32 %v395
        %v397 = vpack.c.bf16 %v396, %v396
        %v398 = vld [vmem:[%s3] sm:$0xf]
        %v399 = vld [vmem:[%s3 + $0x4] sm:$0xf]
        %v400 = vld [vmem:[%s3 + $0x8] sm:$0xf]
        %v401 = vld [vmem:[%s3 + $0xc] sm:$0xf]
        %v402 = vld [vmem:[%s3 + $0x10] sm:$0xf]
        %v403 = vld [vmem:[%s3 + $0x14] sm:$0xf]
        %v404 = vld [vmem:[%s3 + $0x18] sm:$0xf]
        %v405 = vld [vmem:[%s3 + $0x1c] sm:$0xf]
        %v406 = vld [vmem:[%s3 + $0x20] sm:$0xf]
        %v407 = vld [vmem:[%s3 + $0x24] sm:$0xf]
        %v408 = vld [vmem:[%s3 + $0x28] sm:$0xf]
        %v409 = vld [vmem:[%s3 + $0x2c] sm:$0xf]
        %v410 = vld [vmem:[%s3 + $0x30] sm:$0xf]
        %v411 = vld [vmem:[%s3 + $0x34] sm:$0xf]
        %v412 = vld [vmem:[%s3 + $0x38] sm:$0xf]
        %v413 = vld [vmem:[%s3 + $0x3c] sm:$0xf]
        %v430 = vunpack.c.l.b16 %v398
        %v431 = vunpack.c.l.b16 %v399
        %v432 = vunpack.c.l.b16 %v400
        %v433 = vunpack.c.l.b16 %v401
        %v434 = vunpack.c.l.b16 %v402
        %v435 = vunpack.c.l.b16 %v403
        %v436 = vunpack.c.l.b16 %v404
        %v437 = vunpack.c.l.b16 %v405
        %v438 = vunpack.c.l.b16 %v406
        %v439 = vunpack.c.l.b16 %v407
        %v440 = vunpack.c.l.b16 %v408
        %v441 = vunpack.c.l.b16 %v409
        %v442 = vunpack.c.l.b16 %v410
        %v443 = vunpack.c.l.b16 %v411
        %v444 = vunpack.c.l.b16 %v412
        %v445 = vunpack.c.l.b16 %v413
        %v446 = vpack.c.b16 %v431, %v430
        %v447 = vpack.c.b16 %v433, %v432
        %v448 = vpack.c.b16 %v435, %v434
        %v449 = vpack.c.b16 %v437, %v436
        %v450 = vpack.c.b16 %v439, %v438
        %v451 = vpack.c.b16 %v441, %v440
        %v452 = vpack.c.b16 %v443, %v442
        %v453 = vpack.c.b16 %v445, %v444
        %462 = vmatpush.bf16.msra.mxu0 %v453
        %463 = vmatpush.bf16.msra.mxu0 %v452
        %464 = vmatpush.bf16.msra.mxu0 %v451
        %465 = vmatpush.bf16.msra.mxu0 %v450
        %466 = vmatpush.bf16.msra.mxu0 %v449
        %467 = vmatpush.bf16.msra.mxu0 %v448
        %468 = vmatpush.bf16.msra.mxu0 %v447
        %469 = vmatpush.bf16.msra.mxu0 %v446
        %470 = vmatmul.bf16.gmra.mxu0 %v397
        %v471 = vpop.f32.mrf.mxu0
        %v472 = vadd.f32 0.0, %v471
        %v473 = vpop.f32.mrf.mxu0
        %474 = vdwg.mxu0
        %v475 = vld [vmem:[%s4] sm:$0x1]
        %v476 = vmul.f32 %v472, %v472
        %vm477 = vcmask 261120
        %v478 = vsel %vm477, %v476, 0.0
        %479 = vadd.xlane.f32.xlu0 %v478
        %v480 = vpop.xlane.xlu0 %479
        %v481 = vrcp.pop 32.0
        %v482 = vmul.f32 32.0, %v481
        %v483 = vsub.f32 1.0, %v482
        %v484 = vmul.f32 %v481, %v483
        %v485 = vadd.f32 %v481, %v484
        %vm486 = vweird.f32 %v481
        %v487 = vsel %vm486, %v481, %v485
        %v488 = vmul.f32 %v480, %v487
        %v489 = vadd.f32 %v488, 1e-06
        %v490 = vrsqrt.pop %v489
        %v491 = vmul.f32 %v490, %v489
        %v492 = vmul.f32 %v491, %v490
        %v493 = vmul.f32 0.5, %v492
        %v494 = vsub.f32 1.5, %v493
        %v495 = vmul.f32 %v490, %v494
        %vm496 = vweird.f32 %v489
        %vm497 = vweird.f32 %v490
        %vm498 = vmor %vm496, %vm497
        %v499 = vsel %vm498, %v490, %v495
        %v500 = vmul.f32 %v472, %v499
        %v502 = vperm.slane %v475, 0
        %v504 = vmul.f32 %v500, %v502
        %v505 = vpack.c.bf16 %v504, %v504
        %v506 = vld [vmem:[%s5] sm:$0xf]
        %v507 = vld [vmem:[%s5 + $0x4] sm:$0xf]
        %v508 = vld [vmem:[%s5 + $0x8] sm:$0xf]
        %v509 = vld [vmem:[%s5 + $0xc] sm:$0xf]
        %v514 = vunpack.c.l.b16 %v506
        %v515 = vunpack.c.l.b16 %v507
        %v516 = vunpack.c.l.b16 %v508
        %v517 = vunpack.c.l.b16 %v509
        %v518 = vpack.c.b16 %v515, %v514
        %v519 = vpack.c.b16 %v517, %v516
        %v523 = vsel %vm477, %v505, 0
        %525 = vmatpush.bf16.msra.mxu0 0
        %526 = vmatpush.bf16.msra.mxu0 0
        %527 = vmatpush.bf16.msra.mxu0 0
        %528 = vmatpush.bf16.msra.mxu0 0
        %529 = vmatpush.bf16.msra.mxu0 0
        %530 = vmatpush.bf16.msra.mxu0 0
        %531 = vmatpush.bf16.msra.mxu0 %v519
        %532 = vmatpush.bf16.msra.mxu0 %v518
        %533 = vmatmul.bf16.gmra.mxu0 %v523
        %v534 = vpop.f32.mrf.mxu0
        %v535 = vadd.f32 0.0, %v534
        %v536 = vpop.f32.mrf.mxu0
        %537 = vdwg.mxu0
        %vm538 = vcmp.gt.f32.partialorder %v387, 0.0
        %v539 = vsel %vm538, 0.0, -1e+09
        %v540 = vld [vmem:[%s6] sm:$0xf]
        %v541 = vld [vmem:[%s6 + $0x4] sm:$0xf]
        %v542 = vld [vmem:[%s6 + $0x8] sm:$0xf]
        %v543 = vld [vmem:[%s6 + $0xc] sm:$0xf]
        %v544 = vpack.c.bf16 %v535, %v535
        %546 = vrot.lane.b32.xlu0 %v544, 96
        %v547 = vpop.permute.xlu0 %546
        %vm548 = vcmask 64512
        %v550 = vsel %vm548, %v544, 0
        %v553 = vsel %vm548, %v547, 0
        %555 = vmatpush.bf16.xpose.msra.mxu0 0
        %556 = vmatpush.bf16.xpose.msra.mxu0 0
        %557 = vmatpush.bf16.xpose.msra.mxu0 0
        %558 = vmatpush.bf16.xpose.msra.mxu0 0
        %559 = vmatpush.bf16.xpose.msra.mxu0 0
        %560 = vmatpush.bf16.xpose.msra.mxu0 0
        %561 = vmatpush.bf16.xpose.msra.mxu0 0
        %562 = vmatpush.bf16.xpose.msra.mxu0 %v553
        %563 = vmatmul.bf16.gmra.mxu0 %v550
        %v564 = vpop.f32.mrf.mxu0
        %v565 = vadd.f32 0.0, %v564
        %v566 = vpop.f32.mrf.mxu0
        %567 = vdwg.mxu0
        %v568 = vmul.f32 %v565, 0.35355338
        %v570 = vperm.slane %v539, 0
        %v572 = vadd.f32 %v568, %v570
        %v573 = vsel %vm548, %v572, -inf
        %574 = vmax.xlane.f32.xlu0 %v573
        %v575 = vpop.xlane.xlu0 %574
        %v576 = vsub.f32 %v572, %v575
        %v577 = vmul.f32 %v576, 1.442695
        %v578 = vpow.pop %v577
        %v579 = vsel %vm548, %v578, 0.0
        %580 = vadd.xlane.f32.xlu0 %v579
        %v581 = vpop.xlane.xlu0 %580
        %v582 = vrcp.pop %v581
        %v583 = vmul.f32 %v578, %v582
        %v584 = vpack.c.bf16 %v583, %v583
        %585 = vrot.lane.b32.xlu0 %v544, 64
        %v586 = vpop.permute.xlu0 %585
        %v588 = vsel %vm548, %v584, 0
        %vm590 = vcmask 1043456
        %v592 = vsel %vm590, %v586, 0
        %594 = vmatpush.bf16.msra.mxu0 0
        %595 = vmatpush.bf16.msra.mxu0 0
        %596 = vmatpush.bf16.msra.mxu0 0
        %597 = vmatpush.bf16.msra.mxu0 0
        %598 = vmatpush.bf16.msra.mxu0 0
        %599 = vmatpush.bf16.msra.mxu0 0
        %600 = vmatpush.bf16.msra.mxu0 0
        %601 = vmatpush.bf16.msra.mxu0 %v592
        %602 = vmatmul.bf16.gmra.mxu0 %v588
        %v603 = vpop.f32.mrf.mxu0
        %v604 = vadd.f32 0.0, %v603
        %v605 = vpop.f32.mrf.mxu0
        %606 = vdwg.mxu0
        %v607 = vpack.c.bf16 %v604, %v604
        %608 = vrot.lane.b32.xlu0 %v544, 120
        %v609 = vpop.permute.xlu0 %608
        %610 = vrot.lane.b32.xlu0 %v544, 88
        %v611 = vpop.permute.xlu0 %610
        %v613 = vsel %vm548, %v609, 0
        %v616 = vsel %vm548, %v611, 0
        %618 = vmatpush.bf16.xpose.msra.mxu0 0
        %619 = vmatpush.bf16.xpose.msra.mxu0 0
        %620 = vmatpush.bf16.xpose.msra.mxu0 0
        %621 = vmatpush.bf16.xpose.msra.mxu0 0
        %622 = vmatpush.bf16.xpose.msra.mxu0 0
        %623 = vmatpush.bf16.xpose.msra.mxu0 0
        %624 = vmatpush.bf16.xpose.msra.mxu0 0
        %625 = vmatpush.bf16.xpose.msra.mxu0 %v616
        %626 = vmatmul.bf16.gmra.mxu0 %v613
        %v627 = vpop.f32.mrf.mxu0
        %v628 = vadd.f32 0.0, %v627
        %v629 = vpop.f32.mrf.mxu0
        %630 = vdwg.mxu0
        %v631 = vmul.f32 %v628, 0.35355338
        %v632 = vadd.f32 %v631, %v570
        %v633 = vsel %vm548, %v632, -inf
        %634 = vmax.xlane.f32.xlu0 %v633
        %v635 = vpop.xlane.xlu0 %634
        %v636 = vsub.f32 %v632, %v635
        %v637 = vmul.f32 %v636, 1.442695
        %v638 = vpow.pop %v637
        %v639 = vsel %vm548, %v638, 0.0
        %640 = vadd.xlane.f32.xlu0 %v639
        %v641 = vpop.xlane.xlu0 %640
        %v642 = vrcp.pop %v641
        %v643 = vmul.f32 %v638, %v642
        %v644 = vpack.c.bf16 %v643, %v643
        %645 = vrot.lane.b32.xlu0 %v544, 56
        %v646 = vpop.permute.xlu0 %645
        %v648 = vsel %vm548, %v644, 0
        %v651 = vsel %vm590, %v646, 0
        %653 = vmatpush.bf16.msra.mxu0 0
        %654 = vmatpush.bf16.msra.mxu0 0
        %655 = vmatpush.bf16.msra.mxu0 0
        %656 = vmatpush.bf16.msra.mxu0 0
        %657 = vmatpush.bf16.msra.mxu0 0
        %658 = vmatpush.bf16.msra.mxu0 0
        %659 = vmatpush.bf16.msra.mxu0 0
        %660 = vmatpush.bf16.msra.mxu0 %v651
        %661 = vmatmul.bf16.gmra.mxu0 %v648
        %v662 = vpop.f32.mrf.mxu0
        %v663 = vadd.f32 0.0, %v662
        %v664 = vpop.f32.mrf.mxu0
        %665 = vdwg.mxu0
        %v666 = vpack.c.bf16 %v663, %v663
        %v668 = vsel %vm548, %v666, 0
        %v671 = vsel %vm590, %v541, 0
        %673 = vmatpush.bf16.msra.mxu0 0
        %674 = vmatpush.bf16.msra.mxu0 0
        %675 = vmatpush.bf16.msra.mxu0 0
        %676 = vmatpush.bf16.msra.mxu0 0
        %677 = vmatpush.bf16.msra.mxu0 0
        %678 = vmatpush.bf16.msra.mxu0 0
        %679 = vmatpush.bf16.msra.mxu0 0
        %680 = vmatpush.bf16.msra.mxu0 %v671
        %681 = vmatmul.bf16.gmra.mxu0 %v668
        %v682 = vpop.f32.mrf.mxu0
        %v683 = vadd.f32 0.0, %v682
        %v684 = vpop.f32.mrf.mxu0
        %685 = vdwg.mxu0
        %v687 = vsel %vm548, %v607, 0
        %v690 = vsel %vm590, %v540, 0
        %692 = vmatpush.bf16.msra.mxu0 0
        %693 = vmatpush.bf16.msra.mxu0 0
        %694 = vmatpush.bf16.msra.mxu0 0
        %695 = vmatpush.bf16.msra.mxu0 0
        %696 = vmatpush.bf16.msra.mxu0 0
        %697 = vmatpush.bf16.msra.mxu0 0
        %698 = vmatpush.bf16.msra.mxu0 0
        %699 = vmatpush.bf16.msra.mxu0 %v690
        %700 = vmatmul.bf16.gmra.mxu0 %v687
        %v701 = vpop.f32.mrf.mxu0
        %v702 = vadd.f32 %v683, %v701
        %v703 = vpop.f32.mrf.mxu0
        %704 = vdwg.mxu0
        %705 = vrot.lane.b32.xlu0 %v544, 112
        %v706 = vpop.permute.xlu0 %705
        %707 = vrot.lane.b32.xlu0 %v544, 80
        %v708 = vpop.permute.xlu0 %707
        %v710 = vsel %vm548, %v706, 0
        %v713 = vsel %vm548, %v708, 0
        %715 = vmatpush.bf16.xpose.msra.mxu0 0
        %716 = vmatpush.bf16.xpose.msra.mxu0 0
        %717 = vmatpush.bf16.xpose.msra.mxu0 0
        %718 = vmatpush.bf16.xpose.msra.mxu0 0
        %719 = vmatpush.bf16.xpose.msra.mxu0 0
        %720 = vmatpush.bf16.xpose.msra.mxu0 0
        %721 = vmatpush.bf16.xpose.msra.mxu0 0
        %722 = vmatpush.bf16.xpose.msra.mxu0 %v713
        %723 = vmatmul.bf16.gmra.mxu0 %v710
        %v724 = vpop.f32.mrf.mxu0
        %v725 = vadd.f32 0.0, %v724
        %v726 = vpop.f32.mrf.mxu0
        %727 = vdwg.mxu0
        %v728 = vmul.f32 %v725, 0.35355338
        %v729 = vadd.f32 %v728, %v570
        %v730 = vsel %vm548, %v729, -inf
        %731 = vmax.xlane.f32.xlu0 %v730
        %v732 = vpop.xlane.xlu0 %731
        %v733 = vsub.f32 %v729, %v732
        %v734 = vmul.f32 %v733, 1.442695
        %v735 = vpow.pop %v734
        %v736 = vsel %vm548, %v735, 0.0
        %737 = vadd.xlane.f32.xlu0 %v736
        %v738 = vpop.xlane.xlu0 %737
        %v739 = vrcp.pop %v738
        %v740 = vmul.f32 %v735, %v739
        %v741 = vpack.c.bf16 %v740, %v740
        %742 = vrot.lane.b32.xlu0 %v544, 48
        %v743 = vpop.permute.xlu0 %742
        %v745 = vsel %vm548, %v741, 0
        %v748 = vsel %vm590, %v743, 0
        %750 = vmatpush.bf16.msra.mxu0 0
        %751 = vmatpush.bf16.msra.mxu0 0
        %752 = vmatpush.bf16.msra.mxu0 0
        %753 = vmatpush.bf16.msra.mxu0 0
        %754 = vmatpush.bf16.msra.mxu0 0
        %755 = vmatpush.bf16.msra.mxu0 0
        %756 = vmatpush.bf16.msra.mxu0 0
        %757 = vmatpush.bf16.msra.mxu0 %v748
        %758 = vmatmul.bf16.gmra.mxu0 %v745
        %v759 = vpop.f32.mrf.mxu0
        %v760 = vadd.f32 0.0, %v759
        %v761 = vpop.f32.mrf.mxu0
        %762 = vdwg.mxu0
        %v763 = vpack.c.bf16 %v760, %v760
        %v765 = vsel %vm548, %v763, 0
        %v768 = vsel %vm590, %v542, 0
        %770 = vmatpush.bf16.msra.mxu0 0
        %771 = vmatpush.bf16.msra.mxu0 0
        %772 = vmatpush.bf16.msra.mxu0 0
        %773 = vmatpush.bf16.msra.mxu0 0
        %774 = vmatpush.bf16.msra.mxu0 0
        %775 = vmatpush.bf16.msra.mxu0 0
        %776 = vmatpush.bf16.msra.mxu0 0
        %777 = vmatpush.bf16.msra.mxu0 %v768
        %778 = vmatmul.bf16.gmra.mxu0 %v765
        %v779 = vpop.f32.mrf.mxu0
        %v780 = vadd.f32 0.0, %v779
        %v781 = vpop.f32.mrf.mxu0
        %782 = vdwg.mxu0
        %v783 = vadd.f32 %v702, %v780
        %784 = vrot.lane.b32.xlu0 %v544, 104
        %v785 = vpop.permute.xlu0 %784
        %786 = vrot.lane.b32.xlu0 %v544, 72
        %v787 = vpop.permute.xlu0 %786
        %v789 = vsel %vm548, %v785, 0
        %v792 = vsel %vm548, %v787, 0
        %794 = vmatpush.bf16.xpose.msra.mxu0 0
        %795 = vmatpush.bf16.xpose.msra.mxu0 0
        %796 = vmatpush.bf16.xpose.msra.mxu0 0
        %797 = vmatpush.bf16.xpose.msra.mxu0 0
        %798 = vmatpush.bf16.xpose.msra.mxu0 0
        %799 = vmatpush.bf16.xpose.msra.mxu0 0
        %800 = vmatpush.bf16.xpose.msra.mxu0 0
        %801 = vmatpush.bf16.xpose.msra.mxu0 %v792
        %802 = vmatmul.bf16.gmra.mxu0 %v789
        %v803 = vpop.f32.mrf.mxu0
        %v804 = vadd.f32 0.0, %v803
        %v805 = vpop.f32.mrf.mxu0
        %806 = vdwg.mxu0
        %v807 = vmul.f32 %v804, 0.35355338
        %v808 = vadd.f32 %v807, %v570
        %v809 = vsel %vm548, %v808, -inf
        %810 = vmax.xlane.f32.xlu0 %v809
        %v811 = vpop.xlane.xlu0 %810
        %v812 = vsub.f32 %v808, %v811
        %v813 = vmul.f32 %v812, 1.442695
        %v814 = vpow.pop %v813
        %v815 = vsel %vm548, %v814, 0.0
        %816 = vadd.xlane.f32.xlu0 %v815
        %v817 = vpop.xlane.xlu0 %816
        %v818 = vrcp.pop %v817
        %v819 = vmul.f32 %v814, %v818
        %v820 = vpack.c.bf16 %v819, %v819
        %821 = vrot.lane.b32.xlu0 %v544, 40
        %v822 = vpop.permute.xlu0 %821
        %v824 = vsel %vm548, %v820, 0
        %v827 = vsel %vm590, %v822, 0
        %829 = vmatpush.bf16.msra.mxu0 0
        %830 = vmatpush.bf16.msra.mxu0 0
        %831 = vmatpush.bf16.msra.mxu0 0
        %832 = vmatpush.bf16.msra.mxu0 0
        %833 = vmatpush.bf16.msra.mxu0 0
        %834 = vmatpush.bf16.msra.mxu0 0
        %835 = vmatpush.bf16.msra.mxu0 0
        %836 = vmatpush.bf16.msra.mxu0 %v827
        %837 = vmatmul.bf16.gmra.mxu0 %v824
        %v838 = vpop.f32.mrf.mxu0
        %v839 = vadd.f32 0.0, %v838
        %v840 = vpop.f32.mrf.mxu0
        %841 = vdwg.mxu0
        %v842 = vpack.c.bf16 %v839, %v839
        %v844 = vsel %vm548, %v842, 0
        %v847 = vsel %vm590, %v543, 0
        %849 = vmatpush.bf16.msra.mxu0 0
        %850 = vmatpush.bf16.msra.mxu0 0
        %851 = vmatpush.bf16.msra.mxu0 0
        %852 = vmatpush.bf16.msra.mxu0 0
        %853 = vmatpush.bf16.msra.mxu0 0
        %854 = vmatpush.bf16.msra.mxu0 0
        %855 = vmatpush.bf16.msra.mxu0 0
        %856 = vmatpush.bf16.msra.mxu0 %v847
        %857 = vmatmul.bf16.gmra.mxu0 %v844
        %v858 = vpop.f32.mrf.mxu0
        %v859 = vadd.f32 0.0, %v858
        %v860 = vpop.f32.mrf.mxu0
        %861 = vdwg.mxu0
        %v862 = vadd.f32 %v783, %v859
        %v863 = vadd.f32 %v472, %v862
        %v864 = vld [vmem:[%s7] sm:$0x1]
        %v865 = vmul.f32 %v863, %v863
        %v866 = vsel %vm477, %v865, 0.0
        %867 = vadd.xlane.f32.xlu0 %v866
        %v868 = vpop.xlane.xlu0 %867
        %v869 = vmul.f32 %v868, %v487
        %v870 = vadd.f32 %v869, 1e-06
        %v871 = vrsqrt.pop %v870
        %v872 = vmul.f32 %v871, %v870
        %v873 = vmul.f32 %v872, %v871
        %v874 = vmul.f32 0.5, %v873
        %v875 = vsub.f32 1.5, %v874
        %v876 = vmul.f32 %v871, %v875
        %vm877 = vweird.f32 %v870
        %vm878 = vweird.f32 %v871
        %vm879 = vmor %vm877, %vm878
        %v880 = vsel %vm879, %v871, %v876
        %v881 = vmul.f32 %v863, %v880
        %v883 = vperm.slane %v864, 0
        %v885 = vmul.f32 %v881, %v883
        %v886 = vpack.c.bf16 %v885, %v885
        %v887 = vld [vmem:[%s8] sm:$0xf]
        %v888 = vld [vmem:[%s8 + $0x4] sm:$0xf]
        %v889 = vld [vmem:[%s8 + $0x8] sm:$0xf]
        %v890 = vld [vmem:[%s8 + $0xc] sm:$0xf]
        %v895 = vunpack.c.l.b16 %v887
        %v896 = vunpack.c.l.b16 %v888
        %v897 = vunpack.c.l.b16 %v889
        %v898 = vunpack.c.l.b16 %v890
        %v899 = vpack.c.b16 %v896, %v895
        %v900 = vpack.c.b16 %v898, %v897
        %v904 = vsel %vm477, %v886, 0
        %906 = vmatpush.bf16.msra.mxu0 0
        %907 = vmatpush.bf16.msra.mxu0 0
        %908 = vmatpush.bf16.msra.mxu0 0
        %909 = vmatpush.bf16.msra.mxu0 0
        %910 = vmatpush.bf16.msra.mxu0 0
        %911 = vmatpush.bf16.msra.mxu0 0
        %912 = vmatpush.bf16.msra.mxu0 %v900
        %913 = vmatpush.bf16.msra.mxu0 %v899
        %914 = vmatmul.bf16.gmra.mxu0 %v904
        %v915 = vpop.f32.mrf.mxu0
        %v916 = vadd.f32 0.0, %v915
        %v917 = vpop.f32.mrf.mxu0
        %918 = vdwg.mxu0
        %v919 = vmax.f32 %v916, 0.0
        %v920 = vpack.c.bf16 %v919, %v919
        %v921 = vld [vmem:[%s9] sm:$0xf]
        %v922 = vld [vmem:[%s9 + $0x4] sm:$0xf]
        %v923 = vld [vmem:[%s9 + $0x8] sm:$0xf]
        %v924 = vld [vmem:[%s9 + $0xc] sm:$0xf]
        %v925 = vld [vmem:[%s9 + $0x10] sm:$0xf]
        %v926 = vld [vmem:[%s9 + $0x14] sm:$0xf]
        %v927 = vld [vmem:[%s9 + $0x18] sm:$0xf]
        %v928 = vld [vmem:[%s9 + $0x1c] sm:$0xf]
        %v937 = vunpack.c.l.b16 %v921
        %v938 = vunpack.c.l.b16 %v922
        %v939 = vunpack.c.l.b16 %v923
        %v940 = vunpack.c.l.b16 %v924
        %v941 = vunpack.c.l.b16 %v925
        %v942 = vunpack.c.l.b16 %v926
        %v943 = vunpack.c.l.b16 %v927
        %v944 = vunpack.c.l.b16 %v928
        %v945 = vpack.c.b16 %v938, %v937
        %v946 = vpack.c.b16 %v940, %v939
        %v947 = vpack.c.b16 %v942, %v941
        %v948 = vpack.c.b16 %v944, %v943
        %vm953 = vcmask 523264
        %v955 = vsel %vm953, %v920, 0
        %957 = vmatpush.bf16.msra.mxu0 0
        %958 = vmatpush.bf16.msra.mxu0 0
        %959 = vmatpush.bf16.msra.mxu0 0
        %960 = vmatpush.bf16.msra.mxu0 0
        %961 = vmatpush.bf16.msra.mxu0 %v948
        %962 = vmatpush.bf16.msra.mxu0 %v947
        %963 = vmatpush.bf16.msra.mxu0 %v946
        %964 = vmatpush.bf16.msra.mxu0 %v945
        %965 = vmatmul.bf16.gmra.mxu0 %v955
        %v966 = vpop.f32.mrf.mxu0
        %v967 = vadd.f32 0.0, %v966
        %v968 = vpop.f32.mrf.mxu0
        %969 = vdwg.mxu0
        %v970 = vadd.f32 %v863, %v967
        %972 = vset.pattern.permute.xlu0 0
        %973 = vperm.xlu0 %972, %v388
        %v974 = vpop.permute.xlu0 %973
        %v976 = vmul.f32 %v970, %v974
        %v977 = vsel %vm477, %v976, 0.0
        %v978 = vrot.slane %v977, 4
        %v979 = vadd.f32 %v977, %v978
        %v980 = vrot.slane %v979, 2
        %v981 = vadd.f32 %v979, %v980
        %v982 = vrot.slane %v981, 1
        %v983 = vadd.f32 %v981, %v982
        %vm984 = vcmask 7168
        %v985 = vsel %vm984, %v388, 0.0
        %v986 = vrot.slane %v985, 4
        %v987 = vadd.f32 %v985, %v986
        %v988 = vrot.slane %v987, 2
        %v989 = vadd.f32 %v987, %v988
        %v990 = vrot.slane %v989, 1
        %v991 = vadd.f32 %v989, %v990
        %v992 = vmax.f32 %v991, 1e-09
        %v993 = vrcp.pop %v992
        %995 = vset.pattern.permute.xlu0 0
        %996 = vperm.xlu0 %995, %v993
        %v997 = vpop.permute.xlu0 %996
        %v999 = vmul.f32 %v983, %v997
        %vm1000 = vcmask 253952
        %1001 = vst.msk [vmem:[%s373] sm:$0x1] %vm1000, %v999
        %s1002 = sand.u32 %s257, 1
        %s1003 = scalar_lea.sflag [#allocation3], %s1002
        %s1004 = sand.u32 %s257, 1
        %s1005 = scalar_lea.vmem [#allocation2], %s1004
        // Predicated region
        $region61: #{sentence_embedder_forward.1} parent=59 // pred_check
          %p1006 = pneg %p267
        $region62: #{sentence_embedder_forward.1} parent=59 // pred_check_branch
          %1008 = sbr.rel (%p1006) target = $region64
        $region63: #{sentence_embedder_forward.1} parent=59 // pred_region
          %1010 = vsyncadd %s1003, 0
          %s1011 = scalar_lea.hbm %s10, %s24
          %s1013 = sshll.u32 %s1005, 4
          %s1014 = int_to_ptr.vmem [resolvable:$true] %s1013
          %s1015 = sshll.u32 %s1011, 4
          %s1016 = int_to_ptr.hbm [resolvable:$true] %s1015
          %1018 = dma.vmem_to_hbm [thread:$0]  %s1014, 16, %s1016, %s1003
        $region64: #{sentence_embedder_forward.1} parent=59 // pred_fallthru
          _
      $region60: #{sentence_embedder_forward.1} parent=5 // pred_fallthru
        _
      %p1019 = scmp.le.s32.totalorder 2, %s19
      // Predicated region
      $region65: #{sentence_embedder_forward.1} parent=5 // pred_check
        %p1020 = pneg %p1019
      $region66: #{sentence_embedder_forward.1} parent=5 // pred_check_branch
        %1022 = sbr.rel (%p1020) target = $region68
      $region67: #{sentence_embedder_forward.1} parent=5 // pred_region
        %s1023 = ssub.s32 %s19, 2
        // Predicated region
        $region69: #{sentence_embedder_forward.1} parent=67 // pred_check
          %p1024 = pneg %p273
        $region70: #{sentence_embedder_forward.1} parent=67 // pred_check_branch
          %1026 = sbr.rel (%p1024) target = $region72
        $region71: #{sentence_embedder_forward.1} parent=67 // pred_region
          %s1027 = sand.u32 %s258, 1
          %s1028 = scalar_lea.sflag [#allocation3], %s1027
          %s1029 = sand.u32 %s258, 1
          %s1030 = scalar_lea.vmem [#allocation2], %s1029
          %1032 = dma.done %s1028, 16
        $region72: #{sentence_embedder_forward.1} parent=67 // pred_fallthru
          _
      $region68: #{sentence_embedder_forward.1} parent=5 // pred_fallthru
        _
    $region6: #{sentence_embedder_forward.1} parent=1 // loop_footer
      %s23 = sadd.s32 1, %s19
    $region7: #{sentence_embedder_forward.1} parent=1 // loop_footer_branch
      %18 = sbr.rel target = $region3
    $region8: #{sentence_embedder_forward.1} parent=1 // loop_exit
      _
    %1033 = vsyncpa [#allocation3], 1
    %s1034 = scalar_lea.sflag [#allocation3], 1
    %1035 = vsyncpa %s1034, 1

</llo_original>
